<compile_context>
chip_gen: v7x
topology: tpu7x:2x2x1
jax: 0.10.0
libtpu: 0.0.40
codegen_flags: <defaults>
</compile_context>

<pallas_src>
import functools

import jax
import jax.numpy as jnp
from jax.experimental import pallas as pl
from jax.experimental.pallas import tpu as pltpu


def _slot_head_kernel(x_ref, w_ref, shift_ref, o_ref, acc_ref, *, width):
    # x_ref:     (1, TCin, H*W)  one Cin tile of one image (channels-first,
    #                            flat spatial; lane-dense minor dim = H*W)
    # w_ref:     (9*Cout, TCin)  merged conv taps, row = (ky*3+kx)*Cout + cout,
    #                            BN scale already folded in (resident slab)
    # shift_ref: (Cout, 1)       beta - running_mean * scale
    # o_ref:     (1, Cout, H*W)  sigmoid(conv + shift); border columns hold
    #                            garbage that the wrapper crops (valid conv)
    # acc_ref:   (9*Cout, H*W)   f32 scratch accumulator across Cin tiles
    k = pl.program_id(1)

    @pl.when(k == 0)
    def _():
        acc_ref[...] = jnp.zeros_like(acc_ref)

    # Single MXU matmul per Cin tile: x streamed through the MXU once for all
    # 9 taps (M=72 row occupancy instead of 9 separate M=8 matmuls).
    acc_ref[...] += jnp.dot(w_ref[...], x_ref[0],
                            preferred_element_type=jnp.float32)

    @pl.when(k == pl.num_programs(1) - 1)
    def _():
        cout = o_ref.shape[1]
        hw = o_ref.shape[2]
        y = shift_ref[...]                     # (Cout, 1), broadcasts over lanes
        for ky in range(3):
            for kx in range(3):
                t = ky * 3 + kx
                z = acc_ref[pl.ds(t * cout, cout), :]   # sublane-aligned slice
                d = ky * width + kx
                if d:
                    # out[:, q] needs tap result at column q + d: a left
                    # rotation by d  ==  roll by hw - d (single XLU op; the
                    # wrapped tail only lands in cropped border columns).
                    z = pltpu.roll(z, shift=hw - d, axis=1)
                y = y + z
        # Sigmoid: exp on the EUP; divide as EUP approx reciprocal refined by
        # one Newton step (f32-accurate, frees VALU slots). Clamp avoids inf.
        e = jnp.exp(jnp.minimum(-y, 80.0))
        den = 1.0 + e
        r = pl.reciprocal(den, approx=True)
        r = r * (2.0 - den * r)                # Newton refinement
        o_ref[0] = r.astype(o_ref.dtype)


def _pick_cin_tile(cin, hw, itemsize, budget_bytes=16 << 20):
    """Largest Cin tile that is a multiple of 128 (weight-block lane dim),
    divides Cin, and keeps one x block under budget; whole Cin when Cin is not
    128-divisible (the BlockSpec lane dim must then equal the full axis)."""
    if cin % 128 != 0:
        return cin
    for cand in range(cin, 127, -128):
        if cin % cand == 0 and cand * hw * itemsize <= budget_bytes:
            return cand
    return 128


def slot_head_forward(x_nchw, w_oihw, gamma, beta, running_mean, running_var,
                      eps=1e-3, *, use_bf16=False):
    """SlotHead forward (eval mode).

    x_nchw:  (N, Cin, H, W) float32   (PyTorch layout)
    w_oihw:  (Cout, Cin, 3, 3) float32
    returns: (N, Cout, H-2, W-2) float32
    """
    N, Cin, H, W = x_nchw.shape
    Cout = w_oihw.shape[0]
    Ho, Wo = H - 2, W - 2
    HW = H * W

    # Fold inference BatchNorm: scale into the conv weights, keep only shift.
    scale = (gamma / jnp.sqrt(running_var + eps)).astype(jnp.float32)
    shift = (beta - running_mean * scale).astype(jnp.float32).reshape(Cout, 1)

    # Weights: (Cout, Cin, 3, 3) -> single merged (9*Cout, Cin) slab,
    # row = (ky*3+kx)*Cout + cout; BN scale folded per output channel.
    w_scaled = w_oihw.astype(jnp.float32) * scale[:, None, None, None]
    w_merged = jnp.transpose(w_scaled, (2, 3, 0, 1)).reshape(9 * Cout, Cin)

    # Input stays NCHW; flattening spatial dims is a free metadata reshape.
    x_flat = x_nchw.reshape(N, Cin, HW)

    if use_bf16:
        # Halves HBM traffic / doubles MXU rate on v6e/v7x; f32 accumulation.
        x_flat = x_flat.astype(jnp.bfloat16)
        w_merged = w_merged.astype(jnp.bfloat16)

    itemsize = jnp.dtype(x_flat.dtype).itemsize
    tcin = _pick_cin_tile(Cin, HW, itemsize)
    n_cin_tiles = Cin // tcin

    # Scoped-VMEM limit from actual block footprints (defaults are 16/32 MiB).
    x_block = tcin * HW * itemsize
    w_block = 9 * Cout * tcin * itemsize
    o_block = Cout * HW * 4
    acc_bytes = 9 * Cout * HW * 4
    needed = 2 * (x_block + w_block + o_block) + acc_bytes + (1 << 20)
    vmem_limit = int(min(128 << 20, max(2 * needed, 32 << 20)))

    cost = pl.CostEstimate(
        flops=2 * N * 9 * Cout * Cin * HW,
        transcendentals=N * Cout * HW,
        bytes_accessed=(x_flat.size * itemsize + w_merged.size * itemsize
                        + N * Cout * HW * 4 + Cout * 4),
    )

    # bf16: allow the f32->bf16 cast of x to fuse into the pallas_call input
    # instead of round-tripping a bf16 copy through HBM.
    allow_fusion = [True, False, False] if use_bf16 else None

    out_flat = pl.pallas_call(
        functools.partial(_slot_head_kernel, width=W),
        out_shape=jax.ShapeDtypeStruct((N, Cout, HW), jnp.float32),
        grid_spec=pltpu.PrefetchScalarGridSpec(
            num_scalar_prefetch=0,
            grid=(N, n_cin_tiles),              # reduction (Cin) axis last
            in_specs=[
                pl.BlockSpec((1, tcin, HW), lambda n, k: (n, k, 0)),
                pl.BlockSpec((9 * Cout, tcin), lambda n, k: (0, k)),
                pl.BlockSpec((Cout, 1), lambda n, k: (0, 0)),
            ],
            out_specs=pl.BlockSpec((1, Cout, HW), lambda n, k: (n, 0, 0)),
            scratch_shapes=[pltpu.VMEM((9 * Cout, HW), jnp.float32)],
        ),
        compiler_params=pltpu.CompilerParams(
            dimension_semantics=("parallel", "arbitrary"),
            vmem_limit_bytes=vmem_limit,
            allow_input_fusion=allow_fusion,
        ),
        cost_estimate=cost,
    )(x_flat, w_merged, shift)

    # Valid-conv crop; output is already channels-first (NCHW), no transposes.
    return out_flat.reshape(N, Cout, H, W)[:, :, :Ho, :Wo]


def _reference(x_nchw, w_oihw, gamma, beta, running_mean, running_var,
               eps=1e-3):
    conv = jax.lax.conv_general_dilated(
        x_nchw, w_oihw, window_strides=(1, 1), padding="VALID",
        dimension_numbers=("NCHW", "OIHW", "NCHW"))
    scale = (gamma / jnp.sqrt(running_var + eps)).reshape(1, -1, 1, 1)
    shift = (beta - running_mean * gamma / jnp.sqrt(running_var + eps)
             ).reshape(1, -1, 1, 1)
    return jax.nn.sigmoid(conv * scale + shift)


if __name__ == "__main__":
    # Small deterministic shapes consistent with the module
    # (Conv2d(Cin, Cout, 3, stride=1, bias=False) + BatchNorm2d(eval) + Sigmoid).
    N, Cin, Cout, H, W = 2, 32, 8, 16, 16
    eps = 1e-3

    key = jax.random.PRNGKey(0)
    k0, k1, k2, k3, k4, k5 = jax.random.split(key, 6)
    x = jax.random.normal(k0, (N, Cin, H, W), jnp.float32)
    w = jax.random.normal(k1, (Cout, Cin, 3, 3), jnp.float32) * 0.05
    gamma = 1.0 + 0.1 * jax.random.normal(k2, (Cout,), jnp.float32)
    beta = 0.1 * jax.random.normal(k3, (Cout,), jnp.float32)
    running_mean = 0.1 * jax.random.normal(k4, (Cout,), jnp.float32)
    running_var = jnp.abs(1.0 + 0.1 * jax.random.normal(k5, (Cout,), jnp.float32))

    ref = _reference(x, w, gamma, beta, running_mean, running_var, eps=eps)

    fwd = jax.jit(functools.partial(slot_head_forward, eps=eps))
    out = fwd(x, w, gamma, beta, running_mean, running_var)
    jax.block_until_ready(out)
    assert out.shape == (N, Cout, H - 2, W - 2), out.shape
    assert jnp.allclose(out, ref, atol=2e-5, rtol=2e-5), float(
        jnp.max(jnp.abs(out - ref)))

    # bf16 input/weight path (memory-bandwidth option on v6e/v7x), f32 accum.
    fwd_bf16 = jax.jit(
        functools.partial(slot_head_forward, eps=eps, use_bf16=True))
    out_bf16 = fwd_bf16(x, w, gamma, beta, running_mean, running_var)
    jax.block_until_ready(out_bf16)
    assert jnp.allclose(out_bf16, ref, atol=2e-2, rtol=2e-2), float(
        jnp.max(jnp.abs(out_bf16 - ref)))

    print("KERNEL_OK")
</pallas_src>

<mosaic_0001>
module attributes {stable_mosaic.version = 11 : i64} {
  func.func @_slot_head_kernel(%arg0: i32, %arg1: i32, %arg2: memref<1x32x256xf32, #tpu.memory_space<vmem>>, %arg3: memref<72x32xf32, #tpu.memory_space<vmem>>, %arg4: memref<8x1xf32, #tpu.memory_space<vmem>>, %arg5: memref<1x8x256xf32, #tpu.memory_space<vmem>>, %arg6: memref<72x256xf32, #tpu.memory_space<vmem>>) attributes {dimension_semantics = [#tpu.dimension_semantics<parallel>, #tpu.dimension_semantics<arbitrary>], iteration_bounds = array<i64: 2, 1>, scalar_prefetch = 0 : i64, scratch_operands = 1 : i64, tpu.core_type = #tpu.core_type<tc>, window_params = [{transform_indices = @transform_0, window_bounds = array<i64: 1, 32, 256>}, {transform_indices = @transform_1, window_bounds = array<i64: 72, 32>}, {pipeline_mode = #tpu.pipeline_mode<synchronous>, transform_indices = @transform_2, window_bounds = array<i64: 8, 1>}, {transform_indices = @transform_3, window_bounds = array<i64: 1, 8, 256>}]} {
    %c0_i32 = arith.constant 0 : i32
    %0 = arith.cmpi eq, %arg1, %c0_i32 : i32
    %1 = arith.extui %0 : i1 to i32
    %c0_i32_0 = arith.constant 0 : i32
    %2 = arith.cmpi ne, %1, %c0_i32_0 : i32
    scf.if %2 {
      %cst_11 = arith.constant 0.000000e+00 : f32
      %13 = vector.broadcast %cst_11 : f32 to vector<72x256xf32>
      %c0_12 = arith.constant 0 : index
      %c0_13 = arith.constant 0 : index
      %14 = vector.load %arg6[%c0_12, %c0_13] : memref<72x256xf32, #tpu.memory_space<vmem>>, vector<72x256xf32>
      tpu.vector_store %arg6[%c0_12, %c0_13], %13 {strides = array<i32>} : memref<72x256xf32, #tpu.memory_space<vmem>>, vector<72x256xf32>,
    } else {
    }
    %c0 = arith.constant 0 : index
    %c0_1 = arith.constant 0 : index
    %3 = vector.load %arg6[%c0, %c0_1] : memref<72x256xf32, #tpu.memory_space<vmem>>, vector<72x256xf32>
    %c0_2 = arith.constant 0 : index
    %c0_3 = arith.constant 0 : index
    %4 = vector.load %arg3[%c0_2, %c0_3] : memref<72x32xf32, #tpu.memory_space<vmem>>, vector<72x32xf32>
    %c0_4 = arith.constant 0 : index
    %c0_5 = arith.constant 0 : index
    %c0_6 = arith.constant 0 : index
    %5 = vector.load %arg2[%c0_4, %c0_5, %c0_6] : memref<1x32x256xf32, #tpu.memory_space<vmem>>, vector<1x32x256xf32>
    %6 = vector.shape_cast %5 : vector<1x32x256xf32> to vector<32x256xf32>
    %cst = arith.constant dense<0.000000e+00> : vector<72x256xf32>
    %7 = tpu.matmul %4, %6, %cst {dimension_numbers = #tpu.dot_dimension_numbers<[1], [0], [0], [1], [0, 0, 1, 1], [], []>} : vector<72x32xf32>, vector<32x256xf32>, vector<72x256xf32> -> vector<72x256xf32>
    %8 = arith.addf %3, %7 : vector<72x256xf32>
    %c0_7 = arith.constant 0 : index
    %c0_8 = arith.constant 0 : index
    %9 = vector.load %arg6[%c0_7, %c0_8] : memref<72x256xf32, #tpu.memory_space<vmem>>, vector<72x256xf32>
    tpu.vector_store %arg6[%c0_7, %c0_8], %8 {strides = array<i32>} : memref<72x256xf32, #tpu.memory_space<vmem>>, vector<72x256xf32>,
    %c0_i32_9 = arith.constant 0 : i32
    %10 = arith.cmpi eq, %arg1, %c0_i32_9 : i32
    %11 = arith.extui %10 : i1 to i32
    %c0_i32_10 = arith.constant 0 : i32
    %12 = arith.cmpi ne, %11, %c0_i32_10 : i32
    scf.if %12 {
      %c0_11 = arith.constant 0 : index
      %c0_12 = arith.constant 0 : index
      %13 = vector.load %arg4[%c0_11, %c0_12] : memref<8x1xf32, #tpu.memory_space<vmem>>, vector<8x1xf32>
      %c0_13 = arith.constant 0 : index
      %c0_14 = arith.constant 0 : index
      %14 = vector.load %arg6[%c0_13, %c0_14] : memref<72x256xf32, #tpu.memory_space<vmem>>, vector<8x256xf32>
      %15 = vector.broadcast %13 : vector<8x1xf32> to vector<8x256xf32>
      %16 = arith.addf %15, %14 : vector<8x256xf32>
      %c8 = arith.constant 8 : index
      %c0_15 = arith.constant 0 : index
      %17 = vector.load %arg6[%c8, %c0_15] : memref<72x256xf32, #tpu.memory_space<vmem>>, vector<8x256xf32>
      %c255_i32 = arith.constant 255 : i32
      %18 = tpu.dynamic_rotate %17 by %c255_i32 dim 1 : vector<8x256xf32>, i32 -> vector<8x256xf32>
      %19 = arith.addf %16, %18 : vector<8x256xf32>
      %c16 = arith.constant 16 : index
      %c0_16 = arith.constant 0 : index
      %20 = vector.load %arg6[%c16, %c0_16] : memref<72x256xf32, #tpu.memory_space<vmem>>, vector<8x256xf32>
      %c254_i32 = arith.constant 254 : i32
      %21 = tpu.dynamic_rotate %20 by %c254_i32 dim 1 : vector<8x256xf32>, i32 -> vector<8x256xf32>
      %22 = arith.addf %19, %21 : vector<8x256xf32>
      %c24 = arith.constant 24 : index
      %c0_17 = arith.constant 0 : index
      %23 = vector.load %arg6[%c24, %c0_17] : memref<72x256xf32, #tpu.memory_space<vmem>>, vector<8x256xf32>
      %c240_i32 = arith.constant 240 : i32
      %24 = tpu.dynamic_rotate %23 by %c240_i32 dim 1 : vector<8x256xf32>, i32 -> vector<8x256xf32>
      %25 = arith.addf %22, %24 : vector<8x256xf32>
      %c32 = arith.constant 32 : index
      %c0_18 = arith.constant 0 : index
      %26 = vector.load %arg6[%c32, %c0_18] : memref<72x256xf32, #tpu.memory_space<vmem>>, vector<8x256xf32>
      %c239_i32 = arith.constant 239 : i32
      %27 = tpu.dynamic_rotate %26 by %c239_i32 dim 1 : vector<8x256xf32>, i32 -> vector<8x256xf32>
      %28 = arith.addf %25, %27 : vector<8x256xf32>
      %c40 = arith.constant 40 : index
      %c0_19 = arith.constant 0 : index
      %29 = vector.load %arg6[%c40, %c0_19] : memref<72x256xf32, #tpu.memory_space<vmem>>, vector<8x256xf32>
      %c238_i32 = arith.constant 238 : i32
      %30 = tpu.dynamic_rotate %29 by %c238_i32 dim 1 : vector<8x256xf32>, i32 -> vector<8x256xf32>
      %31 = arith.addf %28, %30 : vector<8x256xf32>
      %c48 = arith.constant 48 : index
      %c0_20 = arith.constant 0 : index
      %32 = vector.load %arg6[%c48, %c0_20] : memref<72x256xf32, #tpu.memory_space<vmem>>, vector<8x256xf32>
      %c224_i32 = arith.constant 224 : i32
      %33 = tpu.dynamic_rotate %32 by %c224_i32 dim 1 : vector<8x256xf32>, i32 -> vector<8x256xf32>
      %34 = arith.addf %31, %33 : vector<8x256xf32>
      %c56 = arith.constant 56 : index
      %c0_21 = arith.constant 0 : index
      %35 = vector.load %arg6[%c56, %c0_21] : memref<72x256xf32, #tpu.memory_space<vmem>>, vector<8x256xf32>
      %c223_i32 = arith.constant 223 : i32
      %36 = tpu.dynamic_rotate %35 by %c223_i32 dim 1 : vector<8x256xf32>, i32 -> vector<8x256xf32>
      %37 = arith.addf %34, %36 : vector<8x256xf32>
      %c64 = arith.constant 64 : index
      %c0_22 = arith.constant 0 : index
      %38 = vector.load %arg6[%c64, %c0_22] : memref<72x256xf32, #tpu.memory_space<vmem>>, vector<8x256xf32>
      %c222_i32 = arith.constant 222 : i32
      %39 = tpu.dynamic_rotate %38 by %c222_i32 dim 1 : vector<8x256xf32>, i32 -> vector<8x256xf32>
      %40 = arith.addf %37, %39 : vector<8x256xf32>
      %cst_23 = arith.constant 0.000000e+00 : f32
      %41 = vector.broadcast %cst_23 : f32 to vector<8x256xf32>
      %42 = arith.subf %41, %40 : vector<8x256xf32>
      %cst_24 = arith.constant 8.000000e+01 : f32
      %43 = vector.broadcast %cst_24 : f32 to vector<8x256xf32>
      %44 = arith.minimumf %42, %43 : vector<8x256xf32>
      %45 = math.exp %44 : vector<8x256xf32>
      %cst_25 = arith.constant 1.000000e+00 : f32
      %46 = vector.broadcast %cst_25 : f32 to vector<8x256xf32>
      %47 = arith.addf %46, %45 : vector<8x256xf32>
      %48 = tpu.reciprocal %47 {approx = true} : vector<8x256xf32> -> vector<8x256xf32>
      %49 = arith.mulf %47, %48 : vector<8x256xf32>
      %cst_26 = arith.constant 2.000000e+00 : f32
      %50 = vector.broadcast %cst_26 : f32 to vector<8x256xf32>
      %51 = arith.subf %50, %49 : vector<8x256xf32>
      %52 = arith.mulf %48, %51 : vector<8x256xf32>
      %c0_27 = arith.constant 0 : index
      %c0_28 = arith.constant 0 : index
      %c0_29 = arith.constant 0 : index
      %53 = vector.load %arg5[%c0_27, %c0_28, %c0_29] : memref<1x8x256xf32, #tpu.memory_space<vmem>>, vector<1x8x256xf32>
      %54 = vector.shape_cast %53 : vector<1x8x256xf32> to vector<8x256xf32>
      %55 = vector.shape_cast %52 : vector<8x256xf32> to vector<1x8x256xf32>
      tpu.vector_store %arg5[%c0_27, %c0_28, %c0_29], %55 {strides = array<i32>} : memref<1x8x256xf32, #tpu.memory_space<vmem>>, vector<1x8x256xf32>,
    } else {
    }
    return
  }
  func.func @transform_0(%arg0: i32, %arg1: i32) -> (i32, i32, i32) {
    %c0_i32 = arith.constant 0 : i32
    %c0_i32_0 = arith.constant 0 : i32
    return %arg0, %arg1, %c0_i32 : i32, i32, i32
  }
  func.func @transform_1(%arg0: i32, %arg1: i32) -> (i32, i32) {
    %c0_i32 = arith.constant 0 : i32
    %c0_i32_0 = arith.constant 0 : i32
    return %c0_i32, %arg1 : i32, i32
  }
  func.func @transform_2(%arg0: i32, %arg1: i32) -> (i32, i32) {
    %c0_i32 = arith.constant 0 : i32
    %c0_i32_0 = arith.constant 0 : i32
    %c0_i32_1 = arith.constant 0 : i32
    return %c0_i32, %c0_i32_0 : i32, i32
  }
  func.func @transform_3(%arg0: i32, %arg1: i32) -> (i32, i32, i32) {
    %c0_i32 = arith.constant 0 : i32
    %c0_i32_0 = arith.constant 0 : i32
    %c0_i32_1 = arith.constant 0 : i32
    return %arg0, %c0_i32, %c0_i32_0 : i32, i32, i32
  }
}

</mosaic_0001>

<llo_original>
// kernel: slot_head_forward.1
$region0: #{slot_head_forward.1}
  #allocation0 [shape = 'u32[]', space=smem, size = 0x4, offset = 0x4, fixed_abs, tag = 'smem constant byte address 0x4 - core index']
  #allocation1 [shape = 'u32[144,128]{1,0:T(1,128)}', space=vmem, size = 0x12000, scoped, tag = 'internal scratch']
  #allocation2 [shape = 'f32[72,256]{1,0:T(8,128)}', space=vmem, size = 0x12000, scoped, tag = 'scratch operand']
  %s0 = inlined_call_operand.vmem [shape: f32[2,32,256], index: 0, kind: input, shape index: {}]
  %s1 = inlined_call_operand.vmem [shape: f32[72,32], index: 1, kind: input, shape index: {}]
  %s2 = inlined_call_operand.vmem [shape: f32[8,1], index: 2, kind: input, shape index: {}]
  %s3 = inlined_call_operand.vmem [shape: f32[2,8,256], index: 3, kind: output, shape index: {}]
  %s4 = sld [smem:[#allocation0]]
  $region53: #{slot_head_forward.1} parent=0
    _
  %s6 = ssub.s32 1, %s4
  %s7 = scalar_select 0, %s6, %s4
  loop: start=0, step=1, limit=4
  $region2: #{slot_head_forward.1} parent=0 // loop_pre_header
    _
  $region3: #{slot_head_forward.1} parent=0 // loop_header
    %s9 = sphi 0, %s13
    %p10 = scmp.ge.s32.totalorder %s9, 4
    %s16 = sphi 0, %s28
    %s17 = sphi 0, %s24
    %s18 = sphi 0, %s16
    %s19 = sphi 0, %s17
    %s20 = sphi 0, %s18
    %s21 = sphi 0, %s19
    %s33 = sphi 0, %s35
    %s36 = sphi 0, %s33
    %s37 = sphi 0, %s36
    %s53 = sphi 0, %s37
    %s59 = sphi 0, %s61
    %s62 = sphi 0, %s59
    %s63 = sphi 0, %s62
    %s79 = sphi 0, %s63
    %s83 = sphi 0, %s83
    %s85 = sphi 0, %s83
    %s86 = sphi 0, %s85
    %s100 = sphi 0, %s86
    %s106 = sphi 0, %s108
    %s109 = sphi 0, %s106
    %s110 = sphi 0, %s109
    %s126 = sphi 0, %s110
  $region4: #{slot_head_forward.1} parent=0 // loop_header_branch
    %12 = sbr.rel (%p10) target = $region8
  $region5: #{slot_head_forward.1} parent=0 // loop_body
    %s14 = ssub.s32 %s9, 1
    %s15 = ssub.s32 %s9, 2
    %s22 = sadd.s32 1, %s17
    %p23 = scmp.ge.s32.totalorder %s22, 1
    %s24 = scalar_select %p23, 0, %s22
    %s25 = sadd.s32 1, %s16
    %s26 = scalar_select %p23, %s25, %s16
    %p27 = scmp.ge.s32.totalorder %s26, 2
    %s28 = scalar_select %p27, 0, %s26
    %s29 = ssub.s32 %s16, %s28
    %s30 = ssub.s32 %s17, %s24
    %s31 = sor.u32 %s29, %s30
    %p32 = scmp.eq.s32.totalorder %s31, 0
    %s34 = sadd.s32 %s33, 1
    %s35 = scalar_select %p32, %s33, %s34
    %p38 = pneg %p32
    %p39 = scmp.eq.s32.totalorder %s9, 1
    %p40 = por %p38, %p39
    %p41 = scmp.ne.s32.totalorder %s33, %s36
    %p42 = scmp.eq.s32.totalorder %s9, 0
    %p43 = por %p41, %p42
    %p44 = scmp.ne.s32.totalorder %s33, %s36
    %p45 = scmp.eq.s32.totalorder %s14, 1
    %p46 = por %p44, %p45
    %p47 = scmp.ne.s32.totalorder %s36, %s37
    %p48 = scmp.eq.s32.totalorder %s14, 0
    %p49 = por %p47, %p48
    %p50 = scmp.ne.s32.totalorder %s36, %s37
    %p51 = scmp.eq.s32.totalorder %s15, 1
    %p52 = por %p50, %p51
    %p54 = scmp.ne.s32.totalorder %s37, %s53
    %p55 = scmp.eq.s32.totalorder %s15, 0
    %p56 = por %p54, %p55
    %s57 = ssub.s32 %s17, %s24
    %p58 = scmp.eq.s32.totalorder %s57, 0
    %s60 = sadd.s32 %s59, 1
    %s61 = scalar_select %p58, %s59, %s60
    %p64 = pneg %p58
    %p65 = scmp.eq.s32.totalorder %s9, 1
    %p66 = por %p64, %p65
    %p67 = scmp.ne.s32.totalorder %s59, %s62
    %p68 = scmp.eq.s32.totalorder %s9, 0
    %p69 = por %p67, %p68
    %p70 = scmp.ne.s32.totalorder %s59, %s62
    %p71 = scmp.eq.s32.totalorder %s14, 1
    %p72 = por %p70, %p71
    %p73 = scmp.ne.s32.totalorder %s62, %s63
    %p74 = scmp.eq.s32.totalorder %s14, 0
    %p75 = por %p73, %p74
    %p76 = scmp.ne.s32.totalorder %s62, %s63
    %p77 = scmp.eq.s32.totalorder %s15, 1
    %p78 = por %p76, %p77
    %p80 = scmp.ne.s32.totalorder %s63, %s79
    %p81 = scmp.eq.s32.totalorder %s15, 0
    %p82 = por %p80, %p81
    %s84 = sadd.s32 %s83, 1
    %p87 = scmp.eq.s32.totalorder %s9, 1
    %p88 = scmp.ne.s32.totalorder %s83, %s85
    %p89 = scmp.eq.s32.totalorder %s9, 0
    %p90 = por %p88, %p89
    %p91 = scmp.ne.s32.totalorder %s83, %s85
    %p92 = scmp.eq.s32.totalorder %s14, 1
    %p93 = por %p91, %p92
    %p94 = scmp.ne.s32.totalorder %s85, %s86
    %p95 = scmp.eq.s32.totalorder %s14, 0
    %p96 = por %p94, %p95
    %p97 = scmp.ne.s32.totalorder %s85, %s86
    %p98 = scmp.eq.s32.totalorder %s15, 1
    %p99 = por %p97, %p98
    %p101 = scmp.ne.s32.totalorder %s86, %s100
    %p102 = scmp.eq.s32.totalorder %s15, 0
    %p103 = por %p101, %p102
    %s104 = ssub.s32 %s16, %s28
    %p105 = scmp.eq.s32.totalorder %s104, 0
    %s107 = sadd.s32 %s106, 1
    %s108 = scalar_select %p105, %s106, %s107
    %p111 = pneg %p105
    %p112 = scmp.eq.s32.totalorder %s9, 1
    %p113 = por %p111, %p112
    %p114 = scmp.ne.s32.totalorder %s106, %s109
    %p115 = scmp.eq.s32.totalorder %s9, 0
    %p116 = por %p114, %p115
    %p117 = scmp.ne.s32.totalorder %s106, %s109
    %p118 = scmp.eq.s32.totalorder %s14, 1
    %p119 = por %p117, %p118
    %p120 = scmp.ne.s32.totalorder %s109, %s110
    %p121 = scmp.eq.s32.totalorder %s14, 0
    %p122 = por %p120, %p121
    %p123 = scmp.ne.s32.totalorder %s109, %s110
    %p124 = scmp.eq.s32.totalorder %s15, 1
    %p125 = por %p123, %p124
    %p127 = scmp.ne.s32.totalorder %s110, %s126
    %p128 = scmp.eq.s32.totalorder %s15, 0
    %p129 = por %p127, %p128
    %p130 = scmp.le.s32.totalorder 1, %s9
    %p131 = scmp.lt.s32.totalorder %s9, 3
    %p132 = pnand %p130, %p131
    %p133 = pneg %p132
    // Predicated region
    $region9: #{slot_head_forward.1} parent=5 // pred_check
      _
    $region10: #{slot_head_forward.1} parent=5 // pred_check_branch
      %135 = sbr.rel (%p132) target = $region12
    $region11: #{slot_head_forward.1} parent=5 // pred_region
      %s136 = ssub.s32 %s9, 1
      // Predicated region
      $region13: #{slot_head_forward.1} parent=11 // pred_check
        %p137 = pneg %p75
      $region14: #{slot_head_forward.1} parent=11 // pred_check_branch
        %139 = sbr.rel (%p137) target = $region16
      $region15: #{slot_head_forward.1} parent=11 // pred_region
        %p140 = scmp.lt.s32.totalorder %s19, 0
        %s141 = scalar_select %p140, %s19, 0
        %s142 = smul.addr %s141, 8
        %s143 = scalar_lea.vmem %s1, %s142
      $region16: #{slot_head_forward.1} parent=11 // pred_fallthru
        _
      // Predicated region
      $region17: #{slot_head_forward.1} parent=11 // pred_check
        %p144 = pneg %p96
      $region18: #{slot_head_forward.1} parent=11 // pred_check_branch
        %146 = sbr.rel (%p144) target = $region20
      $region19: #{slot_head_forward.1} parent=11 // pred_region
        _
      $region20: #{slot_head_forward.1} parent=11 // pred_fallthru
        _
    $region12: #{slot_head_forward.1} parent=5 // pred_fallthru
      _
    %p147 = scmp.lt.s32.totalorder %s9, 2
    // Predicated region
    $region21: #{slot_head_forward.1} parent=5 // pred_check
      %p148 = pneg %p147
    $region22: #{slot_head_forward.1} parent=5 // pred_check_branch
      %150 = sbr.rel (%p148) target = $region24
    $region23: #{slot_head_forward.1} parent=5 // pred_region
      // Predicated region
      $region25: #{slot_head_forward.1} parent=23 // pred_check
        %p151 = pneg %p43
      $region26: #{slot_head_forward.1} parent=23 // pred_check_branch
        %153 = sbr.rel (%p151) target = $region28
      $region27: #{slot_head_forward.1} parent=23 // pred_region
        %s154 = smul.u32 4, %s17
        %p155 = scmp.lt.s32.totalorder %s16, 1
        %s156 = scalar_select %p155, %s16, 1
        %p157 = scmp.lt.s32.totalorder %s154, 3
        %s158 = scalar_select %p157, %s154, 3
        %s159 = smul.addr %s158, 2
        %s160 = smul.addr %s156, 8
        %s161 = sadd.s32 %s159, %s160
        %s162 = smul.addr %s161, 8
        %s163 = scalar_lea.vmem %s0, %s162
        %s164 = smul.u32 4, %s17
      $region28: #{slot_head_forward.1} parent=23 // pred_fallthru
        _
    $region24: #{slot_head_forward.1} parent=5 // pred_fallthru
      _
    %p165 = scmp.le.s32.totalorder 1, %s9
    %p166 = scmp.lt.s32.totalorder %s9, 3
    %p167 = pnand %p165, %p166
    %p168 = pneg %p167
    // Predicated region
    $region29: #{slot_head_forward.1} parent=5 // pred_check
      _
    $region30: #{slot_head_forward.1} parent=5 // pred_check_branch
      %170 = sbr.rel (%p167) target = $region32
    $region31: #{slot_head_forward.1} parent=5 // pred_region
      %s171 = ssub.s32 %s9, 1
      %s172 = smul.u32 4, %s19
      %p173 = scmp.lt.s32.totalorder %s18, 1
      %s174 = scalar_select %p173, %s18, 1
      %p175 = scmp.lt.s32.totalorder %s172, 3
      %s176 = scalar_select %p175, %s172, 3
      %s177 = smul.addr %s176, 2
      %s178 = smul.addr %s174, 8
      %s179 = sadd.s32 %s177, %s178
      %s180 = smul.addr %s179, 8
      %s181 = scalar_lea.vmem %s0, %s180
      %p182 = pneg %p49
      %p183 = pneg %p46
      %p184 = scmp.lt.s32.totalorder %s19, 0
      %s185 = scalar_select %p184, %s19, 0
      %s186 = smul.addr %s185, 8
      %s187 = scalar_lea.vmem %s1, %s186
      %p188 = pneg %p75
      %p189 = pneg %p72
      %p190 = pneg %p96
      %p191 = pneg %p93
      %p192 = pneg %p122
      %p193 = pneg %p119
      %p194 = scmp.lt.s32.totalorder %s18, 1
      %s195 = scalar_select %p194, %s18, 1
      %s196 = smul.addr %s195, 2
      %s197 = smul.addr %s196, 8
      %s198 = scalar_lea.vmem %s3, %s197
      %s199 = smul.u32 4, %s19
      %p200 = scmp.lt.s32.totalorder %s18, 1
      %s201 = scalar_select %p200, %s18, 1
      %p202 = scmp.lt.s32.totalorder %s199, 3
      %s203 = scalar_select %p202, %s199, 3
      %s204 = smul.addr %s203, 2
      %s205 = smul.addr %s201, 8
      %s206 = sadd.s32 %s204, %s205
      %s207 = smul.addr %s206, 8
      %s208 = scalar_lea.vmem %s0, %s207
      %s209 = smul.u32 4, %s19
      %p210 = scmp.lt.s32.totalorder %s19, 0
      %s211 = scalar_select %p210, %s19, 0
      %s212 = smul.addr %s211, 8
      %s213 = scalar_lea.vmem %s1, %s212
      %p214 = scmp.lt.s32.totalorder %s18, 1
      %s215 = scalar_select %p214, %s18, 1
      %s216 = smul.addr %s215, 2
      %s217 = smul.addr %s216, 8
      %s218 = scalar_lea.vmem %s3, %s217
      %p219 = scmp.eq.s32.totalorder %s19, 0
      // Predicated region
      $region33: #{slot_head_forward.1} parent=31 // pred_check
        %p220 = pneg %p219
      $region34: #{slot_head_forward.1} parent=31 // pred_check_branch
        %222 = sbr.rel (%p220) target = $region36
      $region35: #{slot_head_forward.1} parent=31 // pred_region
        %223 = vst [vmem:[#allocation2] sm:$0xff] 0.0
        %224 = vst [vmem:[#allocation2 + $0x8] sm:$0xff] 0.0
        %225 = vst [vmem:[#allocation2 + $0x10] sm:$0xff] 0.0
        %226 = vst [vmem:[#allocation2 + $0x18] sm:$0xff] 0.0
        %227 = vst [vmem:[#allocation2 + $0x20] sm:$0xff] 0.0
        %228 = vst [vmem:[#allocation2 + $0x28] sm:$0xff] 0.0
        %229 = vst [vmem:[#allocation2 + $0x30] sm:$0xff] 0.0
        %230 = vst [vmem:[#allocation2 + $0x38] sm:$0xff] 0.0
        %231 = vst [vmem:[#allocation2 + $0x40] sm:$0xff] 0.0
        %232 = vst [vmem:[#allocation2 + $0x48] sm:$0xff] 0.0
        %233 = vst [vmem:[#allocation2 + $0x50] sm:$0xff] 0.0
        %234 = vst [vmem:[#allocation2 + $0x58] sm:$0xff] 0.0
        %235 = vst [vmem:[#allocation2 + $0x60] sm:$0xff] 0.0
        %236 = vst [vmem:[#allocation2 + $0x68] sm:$0xff] 0.0
        %237 = vst [vmem:[#allocation2 + $0x70] sm:$0xff] 0.0
        %238 = vst [vmem:[#allocation2 + $0x78] sm:$0xff] 0.0
        %239 = vst [vmem:[#allocation2 + $0x80] sm:$0xff] 0.0
        %240 = vst [vmem:[#allocation2 + $0x88] sm:$0xff] 0.0
      $region36: #{slot_head_forward.1} parent=31 // pred_fallthru
        _
      %v241 = vld [vmem:[#allocation2] sm:$0xff]
      %v242 = vld [vmem:[#allocation2 + $0x8] sm:$0xff]
      %v243 = vld [vmem:[#allocation2 + $0x10] sm:$0xff]
      %v244 = vld [vmem:[#allocation2 + $0x18] sm:$0xff]
      %v245 = vld [vmem:[#allocation2 + $0x20] sm:$0xff]
      %v246 = vld [vmem:[#allocation2 + $0x28] sm:$0xff]
      %v247 = vld [vmem:[#allocation2 + $0x30] sm:$0xff]
      %v248 = vld [vmem:[#allocation2 + $0x38] sm:$0xff]
      %v249 = vld [vmem:[#allocation2 + $0x40] sm:$0xff]
      %v250 = vld [vmem:[#allocation2 + $0x48] sm:$0xff]
      %v251 = vld [vmem:[#allocation2 + $0x50] sm:$0xff]
      %v252 = vld [vmem:[#allocation2 + $0x58] sm:$0xff]
      %v253 = vld [vmem:[#allocation2 + $0x60] sm:$0xff]
      %v254 = vld [vmem:[#allocation2 + $0x68] sm:$0xff]
      %v255 = vld [vmem:[#allocation2 + $0x70] sm:$0xff]
      %v256 = vld [vmem:[#allocation2 + $0x78] sm:$0xff]
      %v257 = vld [vmem:[#allocation2 + $0x80] sm:$0xff]
      %v258 = vld [vmem:[#allocation2 + $0x88] sm:$0xff]
      %v259 = vld [vmem:[%s213] sm:$0xff]
      %v260 = vld [vmem:[%s213 + $0x8] sm:$0xff]
      %v261 = vld [vmem:[%s213 + $0x10] sm:$0xff]
      %v262 = vld [vmem:[%s213 + $0x18] sm:$0xff]
      %v263 = vld [vmem:[%s213 + $0x20] sm:$0xff]
      %v264 = vld [vmem:[%s213 + $0x28] sm:$0xff]
      %v265 = vld [vmem:[%s213 + $0x30] sm:$0xff]
      %v266 = vld [vmem:[%s213 + $0x38] sm:$0xff]
      %v267 = vld [vmem:[%s213 + $0x40] sm:$0xff]
      %v268 = vld [vmem:[%s208] sm:$0xff]
      %v269 = vld [vmem:[%s208 + $0x8] sm:$0xff]
      %v270 = vld [vmem:[%s208 + $0x10] sm:$0xff]
      %v271 = vld [vmem:[%s208 + $0x18] sm:$0xff]
      %v272 = vld [vmem:[%s208 + $0x20] sm:$0xff]
      %v273 = vld [vmem:[%s208 + $0x28] sm:$0xff]
      %v274 = vld [vmem:[%s208 + $0x30] sm:$0xff]
      %v275 = vld [vmem:[%s208 + $0x38] sm:$0xff]
      %vm276 = vcmask 261120
      %v278 = vsel %vm276, %v259, 0
      %v281 = vsel %vm276, %v260, 0
      %v284 = vsel %vm276, %v261, 0
      %v287 = vsel %vm276, %v262, 0
      %v290 = vsel %vm276, %v263, 0
      %v293 = vsel %vm276, %v264, 0
      %v296 = vsel %vm276, %v265, 0
      %v299 = vsel %vm276, %v266, 0
      %v302 = vsel %vm276, %v267, 0
      %304 = vmatprep.subr.mxu0 %v269
      %305 = vmatpush1.msra.mxu0 %v268
      %306 = vmatprep.subr.mxu0 %v271
      %307 = vmatpush1.msra.mxu0 %v270
      %308 = vmatprep.subr.mxu0 %v273
      %309 = vmatpush1.msra.mxu0 %v272
      %310 = vmatprep.subr.mxu0 %v275
      %311 = vmatpush1.msra.mxu0 %v274
      %312 = vmatprep.subr.mxu0 0.0
      %313 = vmatpush1.msra.mxu0 0.0
      %314 = vmatprep.subr.mxu0 0.0
      %315 = vmatpush1.msra.mxu0 0.0
      %316 = vmatprep.subr.mxu0 0.0
      %317 = vmatpush1.msra.mxu0 0.0
      %318 = vmatprep.subr.mxu0 0.0
      %319 = vmatpush1.msra.mxu0 0.0
      %320 = vmatprep.subr.mxu0 0.0
      %321 = vmatpush1.msra.mxu0 0.0
      %322 = vmatprep.subr.mxu0 0.0
      %323 = vmatpush1.msra.mxu0 0.0
      %324 = vmatprep.subr.mxu0 0.0
      %325 = vmatpush1.msra.mxu0 0.0
      %326 = vmatprep.subr.mxu0 0.0
      %327 = vmatpush1.msra.mxu0 0.0
      %328 = vmatprep.subr.mxu0 0.0
      %329 = vmatpush1.msra.mxu0 0.0
      %330 = vmatprep.subr.mxu0 0.0
      %331 = vmatpush1.msra.mxu0 0.0
      %332 = vmatprep.subr.mxu0 0.0
      %333 = vmatpush1.msra.mxu0 0.0
      %334 = vmatprep.subr.mxu0 0.0
      %335 = vmatpush1.msra.mxu0 0.0
      %336 = vmatprep.subr.mxu0 0.0
      %337 = vmatpush1.msra.mxu0 0.0
      %338 = vmatprep.subr.mxu0 0.0
      %339 = vmatpush1.msra.mxu0 0.0
      %340 = vmatprep.subr.mxu0 0.0
      %341 = vmatpush1.msra.mxu0 0.0
      %342 = vmatprep.subr.mxu0 0.0
      %343 = vmatpush1.msra.mxu0 0.0
      %344 = vmatprep.subr.mxu0 0.0
      %345 = vmatpush1.msra.mxu0 0.0
      %346 = vmatprep.subr.mxu0 0.0
      %347 = vmatpush1.msra.mxu0 0.0
      %348 = vmatprep.subr.mxu0 0.0
      %349 = vmatpush1.msra.mxu0 0.0
      %350 = vmatprep.subr.mxu0 0.0
      %351 = vmatpush1.msra.mxu0 0.0
      %352 = vmatprep.subr.mxu0 0.0
      %353 = vmatpush1.msra.mxu0 0.0
      %354 = vmatprep.subr.mxu0 0.0
      %355 = vmatpush1.msra.mxu0 0.0
      %356 = vmatprep.subr.mxu0 0.0
      %357 = vmatpush1.msra.mxu0 0.0
      %358 = vmatprep.subr.mxu0 0.0
      %359 = vmatpush1.msra.mxu0 0.0
      %360 = vmatprep.subr.mxu0 0.0
      %361 = vmatpush1.msra.mxu0 0.0
      %362 = vmatprep.subr.mxu0 0.0
      %363 = vmatpush1.msra.mxu0 0.0
      %364 = vmatprep.subr.mxu0 0.0
      %365 = vmatpush1.msra.mxu0 0.0
      %366 = vmatprep.subr.mxu0 0.0
      %367 = vmatpush1.msra.mxu0 0.0
      %368 = vmatprep.mubr.f32.mxu0 0.0
      %369 = vmatmul.mubr.f32.gmra.mrb[0].mxu0 %v278
      %v370 = vpop.f32.mrb[0].mxu0
      %v371 = vadd.f32 0.0, %v370
      %v372 = vpop.f32.mrb[0].mxu0
      %v373 = vadd.f32 0.0, %v372
      %374 = vmatprep.mubr.f32.mxu0 0.0
      %375 = vmatmul.mubr.f32.gmra.mrb[0].mxu0 %v281
      %v376 = vpop.f32.mrb[0].mxu0
      %v377 = vadd.f32 0.0, %v376
      %v378 = vpop.f32.mrb[0].mxu0
      %v379 = vadd.f32 0.0, %v378
      %380 = vmatprep.mubr.f32.mxu0 0.0
      %381 = vmatmul.mubr.f32.gmra.mrb[0].mxu0 %v284
      %v382 = vpop.f32.mrb[0].mxu0
      %v383 = vadd.f32 0.0, %v382
      %v384 = vpop.f32.mrb[0].mxu0
      %v385 = vadd.f32 0.0, %v384
      %386 = vmatprep.mubr.f32.mxu0 0.0
      %387 = vmatmul.mubr.f32.gmra.mrb[0].mxu0 %v287
      %v388 = vpop.f32.mrb[0].mxu0
      %v389 = vadd.f32 0.0, %v388
      %v390 = vpop.f32.mrb[0].mxu0
      %v391 = vadd.f32 0.0, %v390
      %392 = vmatprep.mubr.f32.mxu0 0.0
      %393 = vmatmul.mubr.f32.gmra.mrb[0].mxu0 %v290
      %v394 = vpop.f32.mrb[0].mxu0
      %v395 = vadd.f32 0.0, %v394
      %v396 = vpop.f32.mrb[0].mxu0
      %v397 = vadd.f32 0.0, %v396
      %398 = vmatprep.mubr.f32.mxu0 0.0
      %399 = vmatmul.mubr.f32.gmra.mrb[0].mxu0 %v293
      %v400 = vpop.f32.mrb[0].mxu0
      %v401 = vadd.f32 0.0, %v400
      %v402 = vpop.f32.mrb[0].mxu0
      %v403 = vadd.f32 0.0, %v402
      %404 = vmatprep.mubr.f32.mxu0 0.0
      %405 = vmatmul.mubr.f32.gmra.mrb[0].mxu0 %v296
      %v406 = vpop.f32.mrb[0].mxu0
      %v407 = vadd.f32 0.0, %v406
      %v408 = vpop.f32.mrb[0].mxu0
      %v409 = vadd.f32 0.0, %v408
      %410 = vmatprep.mubr.f32.mxu0 0.0
      %411 = vmatmul.mubr.f32.gmra.mrb[0].mxu0 %v299
      %v412 = vpop.f32.mrb[0].mxu0
      %v413 = vadd.f32 0.0, %v412
      %v414 = vpop.f32.mrb[0].mxu0
      %v415 = vadd.f32 0.0, %v414
      %416 = vmatprep.mubr.f32.mxu0 0.0
      %417 = vmatmul.mubr.f32.gmra.mrb[0].mxu0 %v302
      %v418 = vpop.f32.mrb[0].mxu0
      %v419 = vadd.f32 0.0, %v418
      %v420 = vpop.f32.mrb[0].mxu0
      %v421 = vadd.f32 0.0, %v420
      %422 = vdwg.mxu0
      %v423 = vadd.f32 %v241, %v371
      %v424 = vadd.f32 %v242, %v373
      %v425 = vadd.f32 %v243, %v377
      %v426 = vadd.f32 %v244, %v379
      %v427 = vadd.f32 %v245, %v383
      %v428 = vadd.f32 %v246, %v385
      %v429 = vadd.f32 %v247, %v389
      %v430 = vadd.f32 %v248, %v391
      %v431 = vadd.f32 %v249, %v395
      %v432 = vadd.f32 %v250, %v397
      %v433 = vadd.f32 %v251, %v401
      %v434 = vadd.f32 %v252, %v403
      %v435 = vadd.f32 %v253, %v407
      %v436 = vadd.f32 %v254, %v409
      %v437 = vadd.f32 %v255, %v413
      %v438 = vadd.f32 %v256, %v415
      %v439 = vadd.f32 %v257, %v419
      %v440 = vadd.f32 %v258, %v421
      %441 = vst [vmem:[#allocation2] sm:$0xff] %v423
      %442 = vst [vmem:[#allocation2 + $0x8] sm:$0xff] %v424
      %443 = vst [vmem:[#allocation2 + $0x10] sm:$0xff] %v425
      %444 = vst [vmem:[#allocation2 + $0x18] sm:$0xff] %v426
      %445 = vst [vmem:[#allocation2 + $0x20] sm:$0xff] %v427
      %446 = vst [vmem:[#allocation2 + $0x28] sm:$0xff] %v428
      %447 = vst [vmem:[#allocation2 + $0x30] sm:$0xff] %v429
      %448 = vst [vmem:[#allocation2 + $0x38] sm:$0xff] %v430
      %449 = vst [vmem:[#allocation2 + $0x40] sm:$0xff] %v431
      %450 = vst [vmem:[#allocation2 + $0x48] sm:$0xff] %v432
      %451 = vst [vmem:[#allocation2 + $0x50] sm:$0xff] %v433
      %452 = vst [vmem:[#allocation2 + $0x58] sm:$0xff] %v434
      %453 = vst [vmem:[#allocation2 + $0x60] sm:$0xff] %v435
      %454 = vst [vmem:[#allocation2 + $0x68] sm:$0xff] %v436
      %455 = vst [vmem:[#allocation2 + $0x70] sm:$0xff] %v437
      %456 = vst [vmem:[#allocation2 + $0x78] sm:$0xff] %v438
      %457 = vst [vmem:[#allocation2 + $0x80] sm:$0xff] %v439
      %458 = vst [vmem:[#allocation2 + $0x88] sm:$0xff] %v440
      // Predicated region
      $region37: #{slot_head_forward.1} parent=31 // pred_check
        %p459 = pneg %p219
      $region38: #{slot_head_forward.1} parent=31 // pred_check_branch
        %461 = sbr.rel (%p459) target = $region40
      $region39: #{slot_head_forward.1} parent=31 // pred_region
        %v462 = vld [vmem:[%s2] sm:$0xff]
        %v463 = vld [vmem:[#allocation2] sm:$0xff]
        %v464 = vld [vmem:[#allocation2 + $0x8] sm:$0xff]
        %466 = vset.pattern.permute.xlu0 0
        %467 = vperm.xlu0 %466, %v462
        %v468 = vpop.permute.xlu0 %467
        %v470 = vadd.f32 %v468, %v463
        %v471 = vadd.f32 %v468, %v464
        %v472 = vld [vmem:[#allocation2 + $0x10] sm:$0xff]
        %v473 = vld [vmem:[#allocation2 + $0x18] sm:$0xff]
        %474 = vrot.lane.b32.xlu0 %v472, 127
        %v475 = vpop.permute.xlu0 %474
        %476 = vrot.lane.b32.xlu0 %v473, 127
        %v477 = vpop.permute.xlu0 %476
        %v478 = vlaneseq
        %v479 = vand.u32 %v478, 127
        %vm480 = vcmp.lt.s32.totalorder %v479, 127
        %v481 = vsel %vm480, %v475, %v477
        %v482 = vsel %vm480, %v477, %v475
        %v483 = vadd.f32 %v470, %v481
        %v484 = vadd.f32 %v471, %v482
        %v485 = vld [vmem:[#allocation2 + $0x20] sm:$0xff]
        %v486 = vld [vmem:[#allocation2 + $0x28] sm:$0xff]
        %487 = vrot.lane.b32.xlu0 %v485, 126
        %v488 = vpop.permute.xlu0 %487
        %489 = vrot.lane.b32.xlu0 %v486, 126
        %v490 = vpop.permute.xlu0 %489
        %vm491 = vcmp.lt.s32.totalorder %v479, 126
        %v492 = vsel %vm491, %v488, %v490
        %v493 = vsel %vm491, %v490, %v488
        %v494 = vadd.f32 %v483, %v492
        %v495 = vadd.f32 %v484, %v493
        %v496 = vld [vmem:[#allocation2 + $0x30] sm:$0xff]
        %v497 = vld [vmem:[#allocation2 + $0x38] sm:$0xff]
        %498 = vrot.lane.b32.xlu0 %v496, 112
        %v499 = vpop.permute.xlu0 %498
        %500 = vrot.lane.b32.xlu0 %v497, 112
        %v501 = vpop.permute.xlu0 %500
        %vm502 = vcmp.lt.s32.totalorder %v479, 112
        %v503 = vsel %vm502, %v499, %v501
        %v504 = vsel %vm502, %v501, %v499
        %v505 = vadd.f32 %v494, %v503
        %v506 = vadd.f32 %v495, %v504
        %v507 = vld [vmem:[#allocation2 + $0x40] sm:$0xff]
        %v508 = vld [vmem:[#allocation2 + $0x48] sm:$0xff]
        %509 = vrot.lane.b32.xlu0 %v507, 111
        %v510 = vpop.permute.xlu0 %509
        %511 = vrot.lane.b32.xlu0 %v508, 111
        %v512 = vpop.permute.xlu0 %511
        %vm513 = vcmp.lt.s32.totalorder %v479, 111
        %v514 = vsel %vm513, %v510, %v512
        %v515 = vsel %vm513, %v512, %v510
        %v516 = vadd.f32 %v505, %v514
        %v517 = vadd.f32 %v506, %v515
        %v518 = vld [vmem:[#allocation2 + $0x50] sm:$0xff]
        %v519 = vld [vmem:[#allocation2 + $0x58] sm:$0xff]
        %520 = vrot.lane.b32.xlu0 %v518, 110
        %v521 = vpop.permute.xlu0 %520
        %522 = vrot.lane.b32.xlu0 %v519, 110
        %v523 = vpop.permute.xlu0 %522
        %vm524 = vcmp.lt.s32.totalorder %v479, 110
        %v525 = vsel %vm524, %v521, %v523
        %v526 = vsel %vm524, %v523, %v521
        %v527 = vadd.f32 %v516, %v525
        %v528 = vadd.f32 %v517, %v526
        %v529 = vld [vmem:[#allocation2 + $0x60] sm:$0xff]
        %v530 = vld [vmem:[#allocation2 + $0x68] sm:$0xff]
        %531 = vrot.lane.b32.xlu0 %v529, 96
        %v532 = vpop.permute.xlu0 %531
        %533 = vrot.lane.b32.xlu0 %v530, 96
        %v534 = vpop.permute.xlu0 %533
        %vm535 = vcmp.lt.s32.totalorder %v479, 96
        %v536 = vsel %vm535, %v532, %v534
        %v537 = vsel %vm535, %v534, %v532
        %v538 = vadd.f32 %v527, %v536
        %v539 = vadd.f32 %v528, %v537
        %v540 = vld [vmem:[#allocation2 + $0x70] sm:$0xff]
        %v541 = vld [vmem:[#allocation2 + $0x78] sm:$0xff]
        %542 = vrot.lane.b32.xlu0 %v540, 95
        %v543 = vpop.permute.xlu0 %542
        %544 = vrot.lane.b32.xlu0 %v541, 95
        %v545 = vpop.permute.xlu0 %544
        %vm546 = vcmp.lt.s32.totalorder %v479, 95
        %v547 = vsel %vm546, %v543, %v545
        %v548 = vsel %vm546, %v545, %v543
        %v549 = vadd.f32 %v538, %v547
        %v550 = vadd.f32 %v539, %v548
        %v551 = vld [vmem:[#allocation2 + $0x80] sm:$0xff]
        %v552 = vld [vmem:[#allocation2 + $0x88] sm:$0xff]
        %553 = vrot.lane.b32.xlu0 %v551, 94
        %v554 = vpop.permute.xlu0 %553
        %555 = vrot.lane.b32.xlu0 %v552, 94
        %v556 = vpop.permute.xlu0 %555
        %vm557 = vcmp.lt.s32.totalorder %v479, 94
        %v558 = vsel %vm557, %v554, %v556
        %v559 = vsel %vm557, %v556, %v554
        %v560 = vadd.f32 %v549, %v558
        %v561 = vadd.f32 %v550, %v559
        %v562 = vsub.f32 0.0, %v560
        %v563 = vsub.f32 0.0, %v561
        %v564 = vmin.f32 %v562, 80.0
        %v565 = vmin.f32 %v563, 80.0
        %v566 = vmul.f32 %v564, 1.442695
        %v567 = vpow.pop %v566
        %v568 = vmul.f32 %v565, 1.442695
        %v569 = vpow.pop %v568
        %v570 = vadd.f32 %v567, 1.0
        %v571 = vadd.f32 %v569, 1.0
        %v572 = vrcp.pop %v570
        %v573 = vrcp.pop %v571
        %v574 = vmul.f32 %v570, %v572
        %v575 = vmul.f32 %v571, %v573
        %v576 = vsub.f32 2.0, %v574
        %v577 = vsub.f32 2.0, %v575
        %v578 = vmul.f32 %v572, %v576
        %v579 = vmul.f32 %v573, %v577
        %580 = vst [vmem:[%s218] sm:$0xff] %v578
        %581 = vst [vmem:[%s218 + $0x8] sm:$0xff] %v579
      $region40: #{slot_head_forward.1} parent=31 // pred_fallthru
        _
      %p582 = scmp.lt.s32.totalorder %s18, 1
      %s583 = scalar_select %p582, %s18, 1
      %s584 = smul.addr %s583, 2
      %s585 = smul.addr %s584, 8
      %s586 = scalar_lea.vmem %s3, %s585
      // Predicated region
      $region41: #{slot_head_forward.1} parent=31 // pred_check
        %p587 = pneg %p119
      $region42: #{slot_head_forward.1} parent=31 // pred_check_branch
        %589 = sbr.rel (%p587) target = $region44
      $region43: #{slot_head_forward.1} parent=31 // pred_region
        _
      $region44: #{slot_head_forward.1} parent=31 // pred_fallthru
        _
    $region32: #{slot_head_forward.1} parent=5 // pred_fallthru
      _
    %p590 = scmp.le.s32.totalorder 2, %s9
    // Predicated region
    $region45: #{slot_head_forward.1} parent=5 // pred_check
      %p591 = pneg %p590
    $region46: #{slot_head_forward.1} parent=5 // pred_check_branch
      %593 = sbr.rel (%p591) target = $region48
    $region47: #{slot_head_forward.1} parent=5 // pred_region
      %s594 = ssub.s32 %s9, 2
      // Predicated region
      $region49: #{slot_head_forward.1} parent=47 // pred_check
        %p595 = pneg %p125
      $region50: #{slot_head_forward.1} parent=47 // pred_check_branch
        %597 = sbr.rel (%p595) target = $region52
      $region51: #{slot_head_forward.1} parent=47 // pred_region
        %p598 = scmp.lt.s32.totalorder %s20, 1
        %s599 = scalar_select %p598, %s20, 1
        %s600 = smul.addr %s599, 2
        %s601 = smul.addr %s600, 8
        %s602 = scalar_lea.vmem %s3, %s601
      $region52: #{slot_head_forward.1} parent=47 // pred_fallthru
        _
    $region48: #{slot_head_forward.1} parent=5 // pred_fallthru
      _
  $region6: #{slot_head_forward.1} parent=0 // loop_footer
    %s13 = sadd.s32 1, %s9
  $region7: #{slot_head_forward.1} parent=0 // loop_footer_branch
    %8 = sbr.rel target = $region3
  $region8: #{slot_head_forward.1} parent=0 // loop_exit
    _

</llo_original>
